<compile_context>
chip_gen: v7x
topology: tpu7x:2x2x1
jax: 0.10.0
libtpu: 0.0.40
codegen_flags: <defaults>
</compile_context>

<pallas_src>
import functools

import jax
import jax.numpy as jnp
from jax.experimental import pallas as pl
from jax.experimental.pallas import tpu as pltpu


# ---------------------------------------------------------------------------
# helpers
# ---------------------------------------------------------------------------

def _vmem_budget_bytes():
    """Per-generation live-VMEM budget for double-buffered blocks."""
    cap = 64 * 1024 * 1024                       # v7x per-TC physical (most conservative)
    try:
        info = pltpu.get_tpu_info()
        cap = int(getattr(info, "vmem_capacity_bytes", cap)) or cap
    except Exception:
        pass
    # ~70% of physical, capped at 96 MiB: ~45 MiB on v7x, ~90 MiB on v5e/v6e.
    return min(int(cap * 0.70), 96 * 1024 * 1024)


def _vmem_limit(live_bytes, budget):
    """vmem_limit_bytes: enough for the chosen blocks (+25%), within budget."""
    return int(min(budget, max(32 * 1024 * 1024, live_bytes + live_bytes // 4)))


def _largest_divisor_multiple(dim, unit, cap):
    """Largest multiple of `unit` that divides `dim` and is <= cap (or None)."""
    best = None
    t = unit
    cap = min(cap, dim)
    while t <= cap:
        if dim % t == 0:
            best = t
        t += unit
    return best


# ---------------------------------------------------------------------------
# kernels
# ---------------------------------------------------------------------------

def _fused_kernel(x_ref, w1t_ref, b1_ref, w2t_ref, b2_ref, o_ref, *, inv_hw):
    """Single-pass SE: pool + excitation MLP + rescale on one resident block."""
    xb = x_ref[...]                                               # (t_n, C, HW)
    # per-(batch, channel) mean, accumulated in f32
    pooled = jnp.sum(xb.astype(jnp.float32), axis=-1) * inv_hw    # (t_n, C)
    # excitation MLP batched across the block's batch elements (no per-sample
    # lane-1 matvecs on the MXU critical path).
    h = jnp.dot(pooled, w1t_ref[...],
                preferred_element_type=jnp.float32) + b1_ref[...]  # (t_n, Cs)
    h = jnp.maximum(h, 0.0)
    g = jnp.dot(h, w2t_ref[...],
                preferred_element_type=jnp.float32) + b2_ref[...]  # (t_n, C)
    g = jax.nn.sigmoid(g)
    # rescale in x's native dtype (gate cast down), lane-broadcast over HW
    o_ref[...] = (xb * g.astype(xb.dtype)[:, :, None]).astype(o_ref.dtype)


def _pool_kernel(x_ref, p_ref, acc_ref, *, inv_hw):
    """Fallback phase 1: per-(batch, channel) mean over HW tiles."""
    t = pl.program_id(1)

    @pl.when(t == 0)
    def _():
        acc_ref[...] = jnp.zeros_like(acc_ref)

    acc_ref[...] += jnp.sum(x_ref[0].astype(jnp.float32), axis=-1, keepdims=True)

    @pl.when(t == pl.num_programs(1) - 1)
    def _():
        p_ref[0] = acc_ref[...] * inv_hw


def _scale_kernel(x_ref, g_ref, o_ref):
    """Fallback phase 2: per-row rescale; gate pre-cast to x's dtype."""
    o_ref[...] = (x_ref[...] * g_ref[...]).astype(o_ref.dtype)


# ---------------------------------------------------------------------------
# wrapper
# ---------------------------------------------------------------------------

def se_block(x, w1, b1, w2, b2, *, force_two_phase=False):
    """SEBlock forward.  x: (N, C, H, W); w1: (Cs, C); b1: (Cs,); w2: (C, Cs); b2: (C,)."""
    N, C, H, W = x.shape
    Cs = w1.shape[0]
    HW = H * W
    itemsize = jnp.dtype(x.dtype).itemsize
    inv_hw = 1.0 / HW

    budget = _vmem_budget_bytes()
    target_blk = min(8 * 1024 * 1024, budget // 5)        # per-block byte target

    # constant parameters, prepared once (f32, matmul-ready layouts)
    w1t = jnp.asarray(w1).T.astype(jnp.float32)           # (C, Cs)
    w2t = jnp.asarray(w2).T.astype(jnp.float32)           # (Cs, C)
    b1f = jnp.asarray(b1).reshape(1, Cs).astype(jnp.float32)
    b2f = jnp.asarray(b2).reshape(1, C).astype(jnp.float32)
    weight_bytes = 4 * (2 * (C * Cs + Cs + Cs * C + C))   # double-buffered weight blocks

    x3 = x.reshape(N, C, HW)
    slab_bytes = C * HW * itemsize                        # one batch element

    # ------------------------- fused single-pass path -------------------------
    if (not force_two_phase) and (4 * slab_bytes + weight_bytes <= budget):
        # batch elements per block, byte-budgeted (2x double-buffered in + out)
        max_tn = max(1, min(target_blk // slab_bytes,
                            (budget - weight_bytes) // (4 * slab_bytes)))
        t_n = 1
        for d in range(1, N + 1):
            if N % d == 0 and d <= max_tn:
                t_n = d
        live = 4 * t_n * slab_bytes + weight_bytes
        out = pl.pallas_call(
            functools.partial(_fused_kernel, inv_hw=inv_hw),
            out_shape=jax.ShapeDtypeStruct((N, C, HW), x.dtype),
            grid_spec=pltpu.PrefetchScalarGridSpec(
                num_scalar_prefetch=0,
                grid=(N // t_n,),
                in_specs=[
                    pl.BlockSpec((t_n, C, HW), lambda n: (n, 0, 0)),
                    pl.BlockSpec((C, Cs), lambda n: (0, 0)),
                    pl.BlockSpec((1, Cs), lambda n: (0, 0)),
                    pl.BlockSpec((Cs, C), lambda n: (0, 0)),
                    pl.BlockSpec((1, C), lambda n: (0, 0)),
                ],
                out_specs=pl.BlockSpec((t_n, C, HW), lambda n: (n, 0, 0)),
            ),
            compiler_params=pltpu.CompilerParams(
                dimension_semantics=("parallel",),
                vmem_limit_bytes=_vmem_limit(live, budget)),
            cost_estimate=pl.CostEstimate(
                flops=2 * N * C * HW + 4 * N * C * Cs,
                transcendentals=N * C,
                bytes_accessed=2 * N * C * HW * itemsize + weight_bytes),
        )(x3, w1t, b1f, w2t, b2f)
        return out.reshape(N, C, H, W)

    # ------------------- fallback: pool -> XLA MLP -> scale -------------------
    # phase 1: pooled mean (N, C) via Pallas (byte-budgeted HW tiles)
    pool_target = budget // 3
    t_hw_p = _largest_divisor_multiple(
        HW, 128, max(128, pool_target // max(1, 2 * C * itemsize)))
    if t_hw_p is None and 2 * C * HW * itemsize <= pool_target:
        t_hw_p = HW                                       # non-128-divisible but fits
    if t_hw_p is not None and 2 * C * t_hw_p * itemsize > budget:
        t_hw_p = None                                     # cannot tile within budget
    if t_hw_p is not None:
        live_p = 2 * C * t_hw_p * itemsize + 4 * C + 2 * C * 4
        pooled = pl.pallas_call(
            functools.partial(_pool_kernel, inv_hw=inv_hw),
            out_shape=jax.ShapeDtypeStruct((N, C, 1), jnp.float32),
            grid_spec=pltpu.PrefetchScalarGridSpec(
                num_scalar_prefetch=0,
                grid=(N, HW // t_hw_p),
                in_specs=[pl.BlockSpec((1, C, t_hw_p), lambda n, t: (n, 0, t))],
                out_specs=pl.BlockSpec((1, C, 1), lambda n, t: (n, 0, 0)),
                scratch_shapes=[pltpu.VMEM((C, 1), jnp.float32)],
            ),
            compiler_params=pltpu.CompilerParams(
                dimension_semantics=("parallel", "arbitrary"),
                vmem_limit_bytes=_vmem_limit(live_p, budget)),
            cost_estimate=pl.CostEstimate(
                flops=N * C * HW, transcendentals=0,
                bytes_accessed=N * C * HW * itemsize + N * C * 4),
        )(x3).reshape(N, C)
    else:
        # pathological shape: cannot tile within the VMEM budget -> plain XLA
        pooled = jnp.mean(x3.astype(jnp.float32), axis=-1)

    # tiny excitation MLP, batched over N, in plain XLA (review-endorsed)
    h = jnp.maximum(pooled @ w1t + b1f, 0.0)              # (N, Cs)
    gate = jax.nn.sigmoid(h @ w2t + b2f).astype(x.dtype)  # (N, C)

    # phase 2: lane/sublane-dense (N*C, HW) rescale, byte-budgeted tiles
    R = N * C
    x2 = x.reshape(R, HW)
    gate2 = gate.reshape(R, 1)
    t_hw_s = _largest_divisor_multiple(HW, 128, max(128, target_blk // (8 * itemsize)))
    if t_hw_s is None:
        t_hw_s = HW                                       # non-128-divisible: full-HW lanes
    t_r = _largest_divisor_multiple(R, 8, max(8, target_blk // (t_hw_s * itemsize)))
    if t_r is None:
        t_r = R
    live_s = 4 * t_r * t_hw_s * itemsize + 2 * t_r * itemsize
    if live_s > budget:
        # pathological shape: cannot tile within the VMEM budget -> plain XLA
        return (x2 * gate2).reshape(N, C, H, W)
    out = pl.pallas_call(
        _scale_kernel,
        out_shape=jax.ShapeDtypeStruct((R, HW), x.dtype),
        grid_spec=pltpu.PrefetchScalarGridSpec(
            num_scalar_prefetch=0,
            grid=(R // t_r, HW // t_hw_s),
            in_specs=[
                pl.BlockSpec((t_r, t_hw_s), lambda r, t: (r, t)),
                pl.BlockSpec((t_r, 1), lambda r, t: (r, 0)),
            ],
            out_specs=pl.BlockSpec((t_r, t_hw_s), lambda r, t: (r, t)),
        ),
        compiler_params=pltpu.CompilerParams(
            dimension_semantics=("parallel", "parallel"),
            vmem_limit_bytes=_vmem_limit(live_s, budget)),
        cost_estimate=pl.CostEstimate(
            flops=R * HW, transcendentals=0,
            bytes_accessed=2 * R * HW * itemsize + R * itemsize),
    )(x2, gate2)
    return out.reshape(N, C, H, W)


def se_block_ref(x, w1, b1, w2, b2):
    """Pure-JAX reference mirroring the PyTorch forward."""
    pooled = jnp.mean(x, axis=(2, 3), keepdims=True)        # (N, C, 1, 1)
    h = jnp.einsum('ncij,sc->nsij', pooled, w1) + b1[None, :, None, None]
    h = jnp.maximum(h, 0.0)
    g = jnp.einsum('nsij,cs->ncij', h, w2) + b2[None, :, None, None]
    g = jax.nn.sigmoid(g)
    return x * g


if __name__ == "__main__":
    # Module config: in_channels=4, squeeze_ratio=0.25 -> squeeze_channels = max(1, 1) = 1
    N, C, H, W = 2, 4, 16, 16
    Cs = max(1, int(C * 0.25))

    key = jax.random.PRNGKey(0)
    kx, k1, k2, k3, k4 = jax.random.split(key, 5)
    x = jax.random.normal(kx, (N, C, H, W), dtype=jnp.float32)
    # deterministic synthetic parameters (same shapes as nn.Conv2d 1x1 kernels)
    w1 = 0.1 * jax.random.normal(k1, (Cs, C), dtype=jnp.float32)   # fc1.weight[:, :, 0, 0]
    b1 = 0.1 * jax.random.normal(k2, (Cs,), dtype=jnp.float32)     # fc1.bias
    w2 = 0.1 * jax.random.normal(k3, (C, Cs), dtype=jnp.float32)   # fc2.weight[:, :, 0, 0]
    b2 = 0.1 * jax.random.normal(k4, (C,), dtype=jnp.float32)      # fc2.bias

    ref = jax.block_until_ready(se_block_ref(x, w1, b1, w2, b2))

    # main (fused single-pass) path
    out = jax.block_until_ready(se_block(x, w1, b1, w2, b2))
    assert out.shape == (N, C, H, W)
    assert jnp.allclose(out, ref, atol=1e-5, rtol=1e-5), "fused path mismatch vs reference"

    # exercise the two-phase fallback path as well (used when C*HW exceeds VMEM budget)
    out_fb = jax.block_until_ready(se_block(x, w1, b1, w2, b2, force_two_phase=True))
    assert jnp.allclose(out_fb, ref, atol=1e-5, rtol=1e-5), "fallback path mismatch vs reference"

    print("KERNEL_OK")
</pallas_src>

<mosaic_0001>
module attributes {stable_mosaic.version = 11 : i64} {
  func.func @_fused_kernel(%arg0: i32, %arg1: memref<2x4x256xf32, #tpu.memory_space<vmem>>, %arg2: memref<4x1xf32, #tpu.memory_space<vmem>>, %arg3: memref<1x1xf32, #tpu.memory_space<vmem>>, %arg4: memref<1x4xf32, #tpu.memory_space<vmem>>, %arg5: memref<1x4xf32, #tpu.memory_space<vmem>>, %arg6: memref<2x4x256xf32, #tpu.memory_space<vmem>>) attributes {dimension_semantics = [#tpu.dimension_semantics<parallel>], iteration_bounds = array<i64: 1>, scalar_prefetch = 0 : i64, scratch_operands = 0 : i64, tpu.core_type = #tpu.core_type<tc>, window_params = [{transform_indices = @transform_0, window_bounds = array<i64: 2, 4, 256>}, {pipeline_mode = #tpu.pipeline_mode<synchronous>, transform_indices = @transform_1, window_bounds = array<i64: 4, 1>}, {pipeline_mode = #tpu.pipeline_mode<synchronous>, transform_indices = @transform_2, window_bounds = array<i64: 1, 1>}, {pipeline_mode = #tpu.pipeline_mode<synchronous>, transform_indices = @transform_3, window_bounds = array<i64: 1, 4>}, {pipeline_mode = #tpu.pipeline_mode<synchronous>, transform_indices = @transform_4, window_bounds = array<i64: 1, 4>}, {transform_indices = @transform_5, window_bounds = array<i64: 2, 4, 256>}]} {
    %c0 = arith.constant 0 : index
    %c0_0 = arith.constant 0 : index
    %c0_1 = arith.constant 0 : index
    %0 = vector.load %arg1[%c0, %c0_0, %c0_1] : memref<2x4x256xf32, #tpu.memory_space<vmem>>, vector<2x4x256xf32>
    %cst = arith.constant dense<0.000000e+00> : vector<2x4xf32>
    %1 = vector.multi_reduction <add>, %0, %cst [2] : vector<2x4x256xf32> to vector<2x4xf32>
    %cst_2 = arith.constant 3.906250e-03 : f32
    %2 = vector.broadcast %cst_2 : f32 to vector<2x4xf32>
    %3 = arith.mulf %1, %2 : vector<2x4xf32>
    %c0_3 = arith.constant 0 : index
    %c0_4 = arith.constant 0 : index
    %4 = vector.load %arg2[%c0_3, %c0_4] : memref<4x1xf32, #tpu.memory_space<vmem>>, vector<4x1xf32>
    %cst_5 = arith.constant dense<0.000000e+00> : vector<2x1xf32>
    %5 = tpu.matmul %3, %4, %cst_5 {dimension_numbers = #tpu.dot_dimension_numbers<[1], [0], [0], [1], [0, 0, 1, 1], [], []>} : vector<2x4xf32>, vector<4x1xf32>, vector<2x1xf32> -> vector<2x1xf32>
    %c0_6 = arith.constant 0 : index
    %c0_7 = arith.constant 0 : index
    %6 = vector.load %arg3[%c0_6, %c0_7] : memref<1x1xf32, #tpu.memory_space<vmem>>, vector<1x1xf32>
    %7 = vector.broadcast %6 : vector<1x1xf32> to vector<2x1xf32>
    %8 = arith.addf %5, %7 : vector<2x1xf32>
    %cst_8 = arith.constant 0.000000e+00 : f32
    %9 = vector.broadcast %cst_8 : f32 to vector<2x1xf32>
    %10 = arith.maximumf %8, %9 : vector<2x1xf32>
    %c0_9 = arith.constant 0 : index
    %c0_10 = arith.constant 0 : index
    %11 = vector.load %arg4[%c0_9, %c0_10] : memref<1x4xf32, #tpu.memory_space<vmem>>, vector<1x4xf32>
    %cst_11 = arith.constant dense<0.000000e+00> : vector<2x4xf32>
    %12 = tpu.matmul %10, %11, %cst_11 {dimension_numbers = #tpu.dot_dimension_numbers<[1], [0], [0], [1], [0, 0, 1, 1], [], []>} : vector<2x1xf32>, vector<1x4xf32>, vector<2x4xf32> -> vector<2x4xf32>
    %c0_12 = arith.constant 0 : index
    %c0_13 = arith.constant 0 : index
    %13 = vector.load %arg5[%c0_12, %c0_13] : memref<1x4xf32, #tpu.memory_space<vmem>>, vector<1x4xf32>
    %14 = vector.broadcast %13 : vector<1x4xf32> to vector<2x4xf32>
    %15 = arith.addf %12, %14 : vector<2x4xf32>
    %16 = arith.negf %15 : vector<2x4xf32>
    %17 = math.exp %16 : vector<2x4xf32>
    %cst_14 = arith.constant 1.000000e+00 : f32
    %18 = vector.broadcast %cst_14 : f32 to vector<2x4xf32>
    %19 = arith.addf %18, %17 : vector<2x4xf32>
    %20 = arith.divf %18, %19 : vector<2x4xf32>
    %21 = vector.shape_cast %20 : vector<2x4xf32> to vector<2x4x1xf32>
    %22 = vector.broadcast %21 : vector<2x4x1xf32> to vector<2x4x256xf32>
    %23 = arith.mulf %0, %22 : vector<2x4x256xf32>
    %c0_15 = arith.constant 0 : index
    %c0_16 = arith.constant 0 : index
    %c0_17 = arith.constant 0 : index
    %24 = vector.load %arg6[%c0_15, %c0_16, %c0_17] : memref<2x4x256xf32, #tpu.memory_space<vmem>>, vector<2x4x256xf32>
    tpu.vector_store %arg6[%c0_15, %c0_16, %c0_17], %23 {strides = array<i32>} : memref<2x4x256xf32, #tpu.memory_space<vmem>>, vector<2x4x256xf32>,
    return
  }
  func.func @transform_0(%arg0: i32) -> (i32, i32, i32) {
    %c0_i32 = arith.constant 0 : i32
    %c0_i32_0 = arith.constant 0 : i32
    %c0_i32_1 = arith.constant 0 : i32
    return %arg0, %c0_i32, %c0_i32_0 : i32, i32, i32
  }
  func.func @transform_1(%arg0: i32) -> (i32, i32) {
    %c0_i32 = arith.constant 0 : i32
    %c0_i32_0 = arith.constant 0 : i32
    %c0_i32_1 = arith.constant 0 : i32
    return %c0_i32, %c0_i32_0 : i32, i32
  }
  func.func @transform_2(%arg0: i32) -> (i32, i32) {
    %c0_i32 = arith.constant 0 : i32
    %c0_i32_0 = arith.constant 0 : i32
    %c0_i32_1 = arith.constant 0 : i32
    return %c0_i32, %c0_i32_0 : i32, i32
  }
  func.func @transform_3(%arg0: i32) -> (i32, i32) {
    %c0_i32 = arith.constant 0 : i32
    %c0_i32_0 = arith.constant 0 : i32
    %c0_i32_1 = arith.constant 0 : i32
    return %c0_i32, %c0_i32_0 : i32, i32
  }
  func.func @transform_4(%arg0: i32) -> (i32, i32) {
    %c0_i32 = arith.constant 0 : i32
    %c0_i32_0 = arith.constant 0 : i32
    %c0_i32_1 = arith.constant 0 : i32
    return %c0_i32, %c0_i32_0 : i32, i32
  }
  func.func @transform_5(%arg0: i32) -> (i32, i32, i32) {
    %c0_i32 = arith.constant 0 : i32
    %c0_i32_0 = arith.constant 0 : i32
    %c0_i32_1 = arith.constant 0 : i32
    return %arg0, %c0_i32, %c0_i32_0 : i32, i32, i32
  }
}

</mosaic_0001>

<llo_original>
// kernel: tpu_custom_call.1
$region0: #{tpu_custom_call.1}
  #allocation0 [shape = 'u32[]', space=smem, size = 0x4, offset = 0x4, fixed_abs, tag = 'smem constant byte address 0x4 - core index']
  #allocation1 [shape = 'u32[144,128]{1,0:T(1,128)}', space=vmem, size = 0x12000, scoped, tag = 'internal scratch']
  #allocation2 [shape = 'f32[1,1]{1,0:T(1,128)S(1)}', space=vmem, size = 0x200, scoped, tag = 'scoped memory for tpu_custom_call.1']
  %s0 = inlined_call_operand.hbm [shape: f32[2,4,256], index: 0, kind: input, shape index: {}]
  %s1 = inlined_call_operand.vmem [shape: f32[4,1], index: 1, kind: input, shape index: {}]
  %s2 = inlined_call_operand.<no memory space> [shape: f32[1,1], index: 2, kind: input, shape index: {}]
  %s3 = inlined_call_operand.vmem [shape: f32[1,4], index: 3, kind: input, shape index: {}]
  %s4 = inlined_call_operand.vmem [shape: f32[1,4], index: 4, kind: input, shape index: {}]
  %s5 = inlined_call_operand.hbm [shape: f32[2,4,256], index: 5, kind: output, shape index: {}]
  %s6 = sld [smem:[#allocation0]]
  $region34: #{tpu_custom_call.1} parent=0
    _
  %s8 = ssub.s32 1, %s6
  %s9 = scalar_select 0, %s8, %s6
  %v10 = vstv %s2
  %11 = vst [vmem:[#allocation2] sm:$0x1] %v10
  $region1: #{tpu_custom_call.1} parent=0
    #allocation3 [shape = 'u8[8192]{0}', space=vmem, size = 0x2000, scoped, tag = 'input window, operand 0, single buffered']
    #allocation4 [shape = 's32[1]{0}', space=sflag, size = 0x4, scoped, tag = 'scoped memory for tpu_custom_call.1']
    #allocation5 [shape = 's32[1]{0}', space=sflag, size = 0x4, scoped, tag = 'scoped memory for tpu_custom_call.1']
    #allocation6 [shape = 'u8[8192]{0}', space=vmem, size = 0x2000, scoped, tag = 'output window, operand 0, single buffered']
    %12 = vsyncpa [#allocation4], 0
    %13 = vsyncpa [#allocation5], 0
    // Predicated region
    $region2: #{tpu_custom_call.1} parent=1 // pred_check
      _
    $region3: #{tpu_custom_call.1} parent=1 // pred_check_branch
      %15 = sbr.rel (0) target = $region5
    $region4: #{tpu_custom_call.1} parent=1 // pred_region
      %s17 = ssub.s32 256, 256
      %18 = vsyncadd [#allocation4], %s17
      %s19 = sshll.u32 [#allocation3], 4
      %s20 = int_to_ptr.vmem [resolvable:$true] %s19
      %25 = dma.hbm_to_vmem [thread:$0]  %s0, 256, %s20, [#allocation4], 128, 128, 8
    $region5: #{tpu_custom_call.1} parent=1 // pred_fallthru
      _
    // Predicated region
    $region6: #{tpu_custom_call.1} parent=1 // pred_check
      _
    $region7: #{tpu_custom_call.1} parent=1 // pred_check_branch
      %27 = sbr.rel (0) target = $region9
    $region8: #{tpu_custom_call.1} parent=1 // pred_region
      _
    $region9: #{tpu_custom_call.1} parent=1 // pred_fallthru
      _
    // Predicated region
    $region10: #{tpu_custom_call.1} parent=1 // pred_check
      _
    $region11: #{tpu_custom_call.1} parent=1 // pred_check_branch
      %29 = sbr.rel (0) target = $region13
    $region12: #{tpu_custom_call.1} parent=1 // pred_region
      _
    $region13: #{tpu_custom_call.1} parent=1 // pred_fallthru
      _
    // Predicated region
    $region14: #{tpu_custom_call.1} parent=1 // pred_check
      _
    $region15: #{tpu_custom_call.1} parent=1 // pred_check_branch
      %31 = sbr.rel (0) target = $region17
    $region16: #{tpu_custom_call.1} parent=1 // pred_region
      _
    $region17: #{tpu_custom_call.1} parent=1 // pred_fallthru
      _
    // Predicated region
    $region18: #{tpu_custom_call.1} parent=1 // pred_check
      _
    $region19: #{tpu_custom_call.1} parent=1 // pred_check_branch
      %33 = sbr.rel (0) target = $region21
    $region20: #{tpu_custom_call.1} parent=1 // pred_region
      _
    $region21: #{tpu_custom_call.1} parent=1 // pred_fallthru
      _
    // Predicated region
    $region22: #{tpu_custom_call.1} parent=1 // pred_check
      _
    $region23: #{tpu_custom_call.1} parent=1 // pred_check_branch
      %35 = sbr.rel (0) target = $region25
    $region24: #{tpu_custom_call.1} parent=1 // pred_region
      %36 = dma.done [#allocation4], 256
    $region25: #{tpu_custom_call.1} parent=1 // pred_fallthru
      _
    %v37 = vld [vmem:[#allocation3] sm:$0xff]
    %v38 = vld [vmem:[#allocation3 + $0x8] sm:$0xff]
    %v41 = vcombine.high %v37, %v37
    %v42 = vcombine.high %v38, %v38
    %vm45 = vcmask 1043456
    %v46 = vsel %vm45, %v37, 0.0
    %v47 = vsel %vm45, %v41, 0.0
    %v48 = vadd.f32 %v46, %v47
    %49 = vadd.xlane.f32.xlu0 %v48
    %v50 = vpop.xlane.xlu0 %49
    %v51 = vsel %vm45, %v38, 0.0
    %v52 = vsel %vm45, %v42, 0.0
    %v53 = vadd.f32 %v51, %v52
    %54 = vadd.xlane.f32.xlu0 %v53
    %v55 = vpop.xlane.xlu0 %54
    %v56 = vmul.f32 %v50, 0.00390625
    %v57 = vmul.f32 %v55, 0.00390625
    %v58 = vld [vmem:[%s1] sm:$0xf]
    %v59 = vld [vmem:[#allocation2] sm:$0x1]
    %v61 = vlaneseq
    %v62 = vshrl.u32 %v61, 7
    %v63 = vsub.s32 0, %v62
    %v64 = vrot.slane %v59, %v63
    %v68 = vlaneseq
    %v69 = vand.u32 %v68, 127
    %v70 = vlaneseq
    %v71 = vshrl.u32 %v70, 7
    %v72 = vsub.s32 %v69, %v71
    %v73 = vrot.slane %v56, %v72
    %v74 = vlaneseq
    %v75 = vshrl.u32 %v74, 7
    %v76 = vsub.s32 %v69, %v75
    %v77 = vrot.slane %v57, %v76
    %vm78 = vcmask 1041409
    %v79 = vsel %vm78, %v77, %v73
    %vm80 = vcmask 31744
    %v81 = vsel %vm80, %v79, 0
    %v84 = vsel %vm45, %v58, 0
    %86 = vmatprep.subr.mxu0 0.0
    %87 = vmatpush1.msra.mxu0 %v84
    %88 = vmatprep.subr.mxu0 0.0
    %89 = vmatpush1.msra.mxu0 0.0
    %90 = vmatprep.subr.mxu0 0.0
    %91 = vmatpush1.msra.mxu0 0.0
    %92 = vmatprep.subr.mxu0 0.0
    %93 = vmatpush1.msra.mxu0 0.0
    %94 = vmatprep.subr.mxu0 0.0
    %95 = vmatpush1.msra.mxu0 0.0
    %96 = vmatprep.subr.mxu0 0.0
    %97 = vmatpush1.msra.mxu0 0.0
    %98 = vmatprep.subr.mxu0 0.0
    %99 = vmatpush1.msra.mxu0 0.0
    %100 = vmatprep.subr.mxu0 0.0
    %101 = vmatpush1.msra.mxu0 0.0
    %102 = vmatprep.subr.mxu0 0.0
    %103 = vmatpush1.msra.mxu0 0.0
    %104 = vmatprep.subr.mxu0 0.0
    %105 = vmatpush1.msra.mxu0 0.0
    %106 = vmatprep.subr.mxu0 0.0
    %107 = vmatpush1.msra.mxu0 0.0
    %108 = vmatprep.subr.mxu0 0.0
    %109 = vmatpush1.msra.mxu0 0.0
    %110 = vmatprep.subr.mxu0 0.0
    %111 = vmatpush1.msra.mxu0 0.0
    %112 = vmatprep.subr.mxu0 0.0
    %113 = vmatpush1.msra.mxu0 0.0
    %114 = vmatprep.subr.mxu0 0.0
    %115 = vmatpush1.msra.mxu0 0.0
    %116 = vmatprep.subr.mxu0 0.0
    %117 = vmatpush1.msra.mxu0 0.0
    %118 = vmatprep.subr.mxu0 0.0
    %119 = vmatpush1.msra.mxu0 0.0
    %120 = vmatprep.subr.mxu0 0.0
    %121 = vmatpush1.msra.mxu0 0.0
    %122 = vmatprep.subr.mxu0 0.0
    %123 = vmatpush1.msra.mxu0 0.0
    %124 = vmatprep.subr.mxu0 0.0
    %125 = vmatpush1.msra.mxu0 0.0
    %126 = vmatprep.subr.mxu0 0.0
    %127 = vmatpush1.msra.mxu0 0.0
    %128 = vmatprep.subr.mxu0 0.0
    %129 = vmatpush1.msra.mxu0 0.0
    %130 = vmatprep.subr.mxu0 0.0
    %131 = vmatpush1.msra.mxu0 0.0
    %132 = vmatprep.subr.mxu0 0.0
    %133 = vmatpush1.msra.mxu0 0.0
    %134 = vmatprep.subr.mxu0 0.0
    %135 = vmatpush1.msra.mxu0 0.0
    %136 = vmatprep.subr.mxu0 0.0
    %137 = vmatpush1.msra.mxu0 0.0
    %138 = vmatprep.subr.mxu0 0.0
    %139 = vmatpush1.msra.mxu0 0.0
    %140 = vmatprep.subr.mxu0 0.0
    %141 = vmatpush1.msra.mxu0 0.0
    %142 = vmatprep.subr.mxu0 0.0
    %143 = vmatpush1.msra.mxu0 0.0
    %144 = vmatprep.subr.mxu0 0.0
    %145 = vmatpush1.msra.mxu0 0.0
    %146 = vmatprep.subr.mxu0 0.0
    %147 = vmatpush1.msra.mxu0 0.0
    %148 = vmatprep.subr.mxu0 0.0
    %149 = vmatpush1.msra.mxu0 0.0
    %150 = vmatprep.mubr.f32.mxu0 0.0
    %151 = vmatmul.mubr.f32.gmra.mrb[0].mxu0 %v81
    %v152 = vpop.f32.mrb[0].mxu0
    %v153 = vadd.f32 %v64, %v152
    %v154 = vpop.f32.mrb[0].mxu0
    %155 = vdwg.mxu0
    %v156 = vmax.f32 %v153, 0.0
    %v157 = vld [vmem:[%s3] sm:$0x1]
    %v158 = vld [vmem:[%s4] sm:$0x1]
    %v160 = vlaneseq
    %v161 = vshrl.u32 %v160, 7
    %v162 = vsub.s32 0, %v161
    %v163 = vrot.slane %v158, %v162
    %vm165 = vcmask 7168
    %v167 = vsel %vm165, %v156, 0
    %vm169 = vcmask 1040384
    %v171 = vsel %vm169, %v157, 0
    %173 = vmatprep.subr.mxu0 0.0
    %174 = vmatpush1.msra.mxu0 %v171
    %175 = vmatprep.subr.mxu0 0.0
    %176 = vmatpush1.msra.mxu0 0.0
    %177 = vmatprep.subr.mxu0 0.0
    %178 = vmatpush1.msra.mxu0 0.0
    %179 = vmatprep.subr.mxu0 0.0
    %180 = vmatpush1.msra.mxu0 0.0
    %181 = vmatprep.subr.mxu0 0.0
    %182 = vmatpush1.msra.mxu0 0.0
    %183 = vmatprep.subr.mxu0 0.0
    %184 = vmatpush1.msra.mxu0 0.0
    %185 = vmatprep.subr.mxu0 0.0
    %186 = vmatpush1.msra.mxu0 0.0
    %187 = vmatprep.subr.mxu0 0.0
    %188 = vmatpush1.msra.mxu0 0.0
    %189 = vmatprep.subr.mxu0 0.0
    %190 = vmatpush1.msra.mxu0 0.0
    %191 = vmatprep.subr.mxu0 0.0
    %192 = vmatpush1.msra.mxu0 0.0
    %193 = vmatprep.subr.mxu0 0.0
    %194 = vmatpush1.msra.mxu0 0.0
    %195 = vmatprep.subr.mxu0 0.0
    %196 = vmatpush1.msra.mxu0 0.0
    %197 = vmatprep.subr.mxu0 0.0
    %198 = vmatpush1.msra.mxu0 0.0
    %199 = vmatprep.subr.mxu0 0.0
    %200 = vmatpush1.msra.mxu0 0.0
    %201 = vmatprep.subr.mxu0 0.0
    %202 = vmatpush1.msra.mxu0 0.0
    %203 = vmatprep.subr.mxu0 0.0
    %204 = vmatpush1.msra.mxu0 0.0
    %205 = vmatprep.subr.mxu0 0.0
    %206 = vmatpush1.msra.mxu0 0.0
    %207 = vmatprep.subr.mxu0 0.0
    %208 = vmatpush1.msra.mxu0 0.0
    %209 = vmatprep.subr.mxu0 0.0
    %210 = vmatpush1.msra.mxu0 0.0
    %211 = vmatprep.subr.mxu0 0.0
    %212 = vmatpush1.msra.mxu0 0.0
    %213 = vmatprep.subr.mxu0 0.0
    %214 = vmatpush1.msra.mxu0 0.0
    %215 = vmatprep.subr.mxu0 0.0
    %216 = vmatpush1.msra.mxu0 0.0
    %217 = vmatprep.subr.mxu0 0.0
    %218 = vmatpush1.msra.mxu0 0.0
    %219 = vmatprep.subr.mxu0 0.0
    %220 = vmatpush1.msra.mxu0 0.0
    %221 = vmatprep.subr.mxu0 0.0
    %222 = vmatpush1.msra.mxu0 0.0
    %223 = vmatprep.subr.mxu0 0.0
    %224 = vmatpush1.msra.mxu0 0.0
    %225 = vmatprep.subr.mxu0 0.0
    %226 = vmatpush1.msra.mxu0 0.0
    %227 = vmatprep.subr.mxu0 0.0
    %228 = vmatpush1.msra.mxu0 0.0
    %229 = vmatprep.subr.mxu0 0.0
    %230 = vmatpush1.msra.mxu0 0.0
    %231 = vmatprep.subr.mxu0 0.0
    %232 = vmatpush1.msra.mxu0 0.0
    %233 = vmatprep.subr.mxu0 0.0
    %234 = vmatpush1.msra.mxu0 0.0
    %235 = vmatprep.subr.mxu0 0.0
    %236 = vmatpush1.msra.mxu0 0.0
    %237 = vmatprep.mubr.f32.mxu0 0.0
    %238 = vmatmul.mubr.f32.gmra.mrb[0].mxu0 %v167
    %v239 = vpop.f32.mrb[0].mxu0
    %v240 = vadd.f32 %v163, %v239
    %v241 = vpop.f32.mrb[0].mxu0
    %242 = vdwg.mxu0
    %v243 = vxor.u32 %v240, 2147483648
    %v244 = vmul.f32 %v243, 1.442695
    %v245 = vpow.pop %v244
    %v246 = vadd.f32 %v245, 1.0
    %v247 = vrcp.pop %v246
    %v248 = vmul.f32 1.0, %v247
    %v249 = vlaneseq
    %v250 = vshrl.u32 %v249, 7
    %v251 = vsub.s32 0, %v250
    %v252 = vrot.slane %v248, %v251
    %254 = vbcast.lane.b32.xlu0 %v252, 256
    %v255 = vpop.permute.xlu0 %254
    %v256 = vlaneseq
    %v257 = vshrl.u32 %v256, 7
    %v258 = vsub.s32 1, %v257
    %v259 = vrot.slane %v248, %v258
    %261 = vbcast.lane.b32.xlu0 %v259, 256
    %v262 = vpop.permute.xlu0 %261
    %v266 = vunpack.c.l.s4 839922192
    %v267 = vunpack.c.0.s8 %v266
    %v268 = vlaneseq
    %v269 = vshrl.u32 %v268, 7
    %v270 = vsub.s32 %v267, %v269
    %v271 = vrot.slane %v255, %v270
    %v273 = vunpack.c.l.s4 839922192
    %v274 = vunpack.c.0.s8 %v273
    %v275 = vlaneseq
    %v276 = vshrl.u32 %v275, 7
    %v277 = vsub.s32 %v274, %v276
    %v278 = vrot.slane %v262, %v277
    %v281 = vmul.f32 %v37, %v271
    %v282 = vmul.f32 %v38, %v278
    %283 = vst [vmem:[#allocation6] sm:$0xff] %v281
    %284 = vst [vmem:[#allocation6 + $0x8] sm:$0xff] %v282
    // Predicated region
    $region26: #{tpu_custom_call.1} parent=1 // pred_check
      _
    $region27: #{tpu_custom_call.1} parent=1 // pred_check_branch
      %286 = sbr.rel (0) target = $region29
    $region28: #{tpu_custom_call.1} parent=1 // pred_region
      %s288 = ssub.s32 256, 256
      %289 = vsyncadd [#allocation5], %s288
      %s290 = sshll.u32 [#allocation6], 4
      %s291 = int_to_ptr.vmem [resolvable:$true] %s290
      %296 = dma.vmem_to_hbm [thread:$0]  %s291, 256, %s5, [#allocation5], 128, 128, 8
    $region29: #{tpu_custom_call.1} parent=1 // pred_fallthru
      _
    // Predicated region
    $region30: #{tpu_custom_call.1} parent=1 // pred_check
      _
    $region31: #{tpu_custom_call.1} parent=1 // pred_check_branch
      %298 = sbr.rel (0) target = $region33
    $region32: #{tpu_custom_call.1} parent=1 // pred_region
      %299 = dma.done [#allocation5], 256
    $region33: #{tpu_custom_call.1} parent=1 // pred_fallthru
      _
    %300 = vsyncpa [#allocation4], 1
    %301 = vsyncpa [#allocation5], 1

</llo_original>
